<compile_context>
chip_gen: v7x
topology: tpu7x:2x2x1
jax: 0.10.0
libtpu: 0.0.40
codegen_flags: <defaults>
</compile_context>

<pallas_src>
import jax
import jax.numpy as jnp
from jax.experimental import pallas as pl
from jax.experimental.pallas import tpu as pltpu

# Problem sizes (small, consistent with the module's conv-backbone usage).
B, C_IN, H, W = 2, 4, 16, 16
C_MID = 8      # encoder hidden channels
C_OUT = 3      # decoder / task output channels
KH = KW = 3    # encoder kernel size (padding=1 -> 'SAME')
N = H * W      # flattened spatial extent (lane dimension)
TAPS = [(dy, dx) for dy in range(KH) for dx in range(KW)]


def backbone_kernel(x_ref, w1_ref, b1_ref, w2_ref, b2_ref, o_ref, patches_ref):
    """Fused encoder+decoder for the whole batch (single invocation).

    x_ref      : (B, C_IN, N)         input activations, flat-spatial (lane-dense)
    w1_ref     : (C_MID, KH*KW*C_IN)  packed encoder conv weights
    b1_ref     : (C_MID, 1)           encoder bias (column)
    w2_ref     : (C_OUT, C_MID)       decoder 1x1 conv weights (transposed)
    b2_ref     : (C_OUT, 1)           decoder bias (column)
    o_ref      : (B, C_OUT, N)        task logits, flat-spatial (lane-dense)
    patches_ref: (B, KH*KW*C_IN, N)   VMEM scratch: im2col matrix
    """
    # Zero the im2col scratch once: this provides the 'SAME' zero-padding ring.
    patches_ref[...] = jnp.zeros(patches_ref.shape, patches_ref.dtype)

    # Horizontal-boundary masks (hoisted; computed once over the full lane axis).
    col = jax.lax.broadcasted_iota(jnp.int32, (1, 1, N), 2) % W
    not_left = col > 0            # valid where the tap reads column w-1
    not_right = col < (W - 1)     # valid where the tap reads column w+1

    # im2col: 9 shifted, boundary-masked flat-lane copies of x become the rows
    # of the conv RHS.  Vertical (h) out-of-range positions fall outside the
    # stored range and stay zero from the pre-fill; horizontal (w) wrap-around
    # positions are masked explicitly.
    for k, (dy, dx) in enumerate(TAPS):
        off = (dy - 1) * W + (dx - 1)          # flat shift for this tap
        lo, hi = max(0, -off), min(N, N - off)  # valid output range
        src = x_ref[:, :, lo + off:hi + off]    # (B, C_IN, hi-lo)
        if dx == 0:
            src = jnp.where(not_left[:, :, lo:hi], src, 0.0)
        elif dx == 2:
            src = jnp.where(not_right[:, :, lo:hi], src, 0.0)
        patches_ref[:, k * C_IN:(k + 1) * C_IN, lo:hi] = src

    # Encoder (one K=36 MXU matmul) + ReLU, then decoder (one matmul), per image.
    # B is tiny and statically unrolled inside this single invocation.
    for b in range(B):
        p = patches_ref[b]                                        # (36, N)
        h = jnp.dot(w1_ref[...], p, preferred_element_type=jnp.float32)
        h = jnp.maximum(h + b1_ref[...], 0.0)                     # (C_MID, N)
        y = jnp.dot(w2_ref[...], h, preferred_element_type=jnp.float32)
        o_ref[b] = y + b2_ref[...]                                # (C_OUT, N) lane-dense


def single_task_backbone(x_nchw, w1, b1, w2, b2):
    """x_nchw: (B, C_IN, H, W) f32 -> (B, C_OUT, H, W) f32 (same semantics as before)."""
    # Layout glue is reshape-only for activations; weights are packed once (tiny).
    xf = x_nchw.reshape(B, C_IN, N)                                   # free reshape of NCHW
    w1_mat = jnp.transpose(w1, (3, 0, 1, 2)).reshape(C_MID, KH * KW * C_IN)
    b1_col = b1.reshape(C_MID, 1)
    w2_t = jnp.transpose(w2)                                          # (C_OUT, C_MID)
    b2_col = b2.reshape(C_OUT, 1)

    out_flat = pl.pallas_call(
        backbone_kernel,
        out_shape=jax.ShapeDtypeStruct((B, C_OUT, N), jnp.float32),
        scratch_shapes=[pltpu.VMEM((B, KH * KW * C_IN, N), jnp.float32)],
        cost_estimate=pl.CostEstimate(
            flops=2 * B * N * (KH * KW * C_IN * C_MID + C_MID * C_OUT),
            transcendentals=0,
            bytes_accessed=4 * (B * C_IN * N + B * C_OUT * N
                                + KH * KW * C_IN * C_MID + C_MID
                                + C_MID * C_OUT + C_OUT),
        ),
    )(xf, w1_mat, b1_col, w2_t, b2_col)

    # Back to the PyTorch NCHW convention (free reshape, no transpose).
    return out_flat.reshape(B, C_OUT, H, W)


def reference(x_nchw, w1, b1, w2, b2):
    """Pure-JAX reference replicating the PyTorch forward semantics."""
    x = jnp.transpose(x_nchw, (0, 2, 3, 1))
    y = jax.lax.conv_general_dilated(
        x, w1, window_strides=(1, 1), padding="SAME",
        dimension_numbers=("NHWC", "HWIO", "NHWC"))
    y = jnp.maximum(y + b1.reshape(1, 1, 1, -1), 0.0)
    z = jnp.einsum("bhwc,cd->bhwd", y, w2) + b2.reshape(1, 1, 1, -1)
    return jnp.transpose(z, (0, 3, 1, 2))


if __name__ == "__main__":
    key = jax.random.PRNGKey(0)
    k_x, k_w1, k_b1, k_w2, k_b2 = jax.random.split(key, 5)

    # Deterministic synthetic parameters (kaiming-ish scaling).
    x = jax.random.normal(k_x, (B, C_IN, H, W), jnp.float32)
    w1 = jax.random.normal(k_w1, (KH, KW, C_IN, C_MID), jnp.float32) \
        * (2.0 / (KH * KW * C_IN)) ** 0.5
    b1 = jax.random.normal(k_b1, (1, C_MID), jnp.float32) * 0.01
    w2 = jax.random.normal(k_w2, (C_MID, C_OUT), jnp.float32) \
        * (2.0 / C_MID) ** 0.5
    b2 = jax.random.normal(k_b2, (1, C_OUT), jnp.float32) * 0.01

    out = jax.block_until_ready(jax.jit(single_task_backbone)(x, w1, b1, w2, b2))
    ref = jax.block_until_ready(reference(x, w1, b1, w2, b2))

    assert out.shape == (B, C_OUT, H, W), out.shape
    assert jnp.allclose(out, ref, atol=1e-4, rtol=1e-4), \
        float(jnp.max(jnp.abs(out - ref)))
    print("KERNEL_OK")
</pallas_src>

<mosaic_0001>
module attributes {stable_mosaic.version = 11 : i64} {
  func.func @backbone_kernel(%arg0: memref<2x4x256xf32, #tpu.memory_space<vmem>>, %arg1: memref<8x36xf32, #tpu.memory_space<vmem>>, %arg2: memref<8x1xf32, #tpu.memory_space<vmem>>, %arg3: memref<3x8xf32, #tpu.memory_space<vmem>>, %arg4: memref<3x1xf32, #tpu.memory_space<vmem>>, %arg5: memref<2x3x256xf32, #tpu.memory_space<vmem>>, %arg6: memref<2x36x256xf32, #tpu.memory_space<vmem>>) attributes {dimension_semantics = [], scalar_prefetch = 0 : i64, scratch_operands = 1 : i64, tpu.core_type = #tpu.core_type<tc>} {
    %cst = arith.constant 0.000000e+00 : f32
    %0 = vector.broadcast %cst : f32 to vector<2x36x256xf32>
    %c0 = arith.constant 0 : index
    %c0_0 = arith.constant 0 : index
    %c0_1 = arith.constant 0 : index
    %1 = vector.load %arg6[%c0, %c0_0, %c0_1] : memref<2x36x256xf32, #tpu.memory_space<vmem>>, vector<2x36x256xf32>
    tpu.vector_store %arg6[%c0, %c0_0, %c0_1], %0 {strides = array<i32>} : memref<2x36x256xf32, #tpu.memory_space<vmem>>, vector<2x36x256xf32>,
    %2 = tpu.iota {dimensions = array<i32: 2>} : vector<1x1x256xi32>
    %c16_i32 = arith.constant 16 : i32
    %c0_i32 = arith.constant 0 : i32
    %3 = arith.cmpi eq, %c16_i32, %c0_i32 : i32
    %c1_i32 = arith.constant 1 : i32
    %4 = arith.select %3, %c1_i32, %c16_i32 : i32
    %5 = vector.broadcast %4 : i32 to vector<1x1x256xi32>
    %6 = arith.remsi %2, %5 : vector<1x1x256xi32>
    %c0_i32_2 = arith.constant 0 : i32
    %7 = vector.broadcast %c0_i32_2 : i32 to vector<1x1x256xi32>
    %8 = arith.cmpi ne, %6, %7 : vector<1x1x256xi32>
    %c0_i32_3 = arith.constant 0 : i32
    %9 = vector.broadcast %c0_i32_3 : i32 to vector<1x1x256xi32>
    %10 = arith.cmpi slt, %6, %9 : vector<1x1x256xi32>
    %c0_i32_4 = arith.constant 0 : i32
    %11 = arith.cmpi slt, %4, %c0_i32_4 : i32
    %12 = vector.broadcast %11 : i1 to vector<1x1x256xi1>
    %13 = vector.broadcast %12 : vector<1x1x256xi1> to vector<1x1x256xi1>
    %14 = arith.xori %10, %13 : vector<1x1x256xi1>
    %15 = arith.andi %14, %8 : vector<1x1x256xi1>
    %16 = vector.broadcast %4 : i32 to vector<1x1x256xi32>
    %17 = arith.addi %6, %16 : vector<1x1x256xi32>
    %18 = arith.select %15, %17, %6 : vector<1x1x256xi1>, vector<1x1x256xi32>
    %c0_i32_5 = arith.constant 0 : i32
    %19 = vector.broadcast %c0_i32_5 : i32 to vector<1x1x256xi32>
    %20 = arith.cmpi sgt, %18, %19 : vector<1x1x256xi32>
    %c15_i32 = arith.constant 15 : i32
    %21 = vector.broadcast %c15_i32 : i32 to vector<1x1x256xi32>
    %22 = arith.cmpi slt, %18, %21 : vector<1x1x256xi32>
    %c0_6 = arith.constant 0 : index
    %c0_7 = arith.constant 0 : index
    %c0_8 = arith.constant 0 : index
    %23 = vector.load %arg0[%c0_6, %c0_7, %c0_8] : memref<2x4x256xf32, #tpu.memory_space<vmem>>, vector<2x4x239xf32>
    %24 = vector.extract_strided_slice %20 {offsets = [0, 0, 17], sizes = [1, 1, 239], strides = [1, 1, 1]} : vector<1x1x256xi1> to vector<1x1x239xi1>
    %cst_9 = arith.constant 0.000000e+00 : f32
    %25 = vector.shape_cast %24 : vector<1x1x239xi1> to vector<1x1x239xi1>
    %26 = vector.broadcast %25 : vector<1x1x239xi1> to vector<2x4x239xi1>
    %27 = vector.broadcast %cst_9 : f32 to vector<2x4x239xf32>
    %28 = arith.select %26, %23, %27 : vector<2x4x239xi1>, vector<2x4x239xf32>
    %c0_10 = arith.constant 0 : index
    %c0_11 = arith.constant 0 : index
    %c17 = arith.constant 17 : index
    %29 = vector.load %arg6[%c0_10, %c0_11, %c17] : memref<2x36x256xf32, #tpu.memory_space<vmem>>, vector<2x4x239xf32>
    tpu.vector_store %arg6[%c0_10, %c0_11, %c17], %28 {strides = array<i32>} : memref<2x36x256xf32, #tpu.memory_space<vmem>>, vector<2x4x239xf32>,
    %c0_12 = arith.constant 0 : index
    %c0_13 = arith.constant 0 : index
    %c0_14 = arith.constant 0 : index
    %30 = vector.load %arg0[%c0_12, %c0_13, %c0_14] : memref<2x4x256xf32, #tpu.memory_space<vmem>>, vector<2x4x240xf32>
    %c0_15 = arith.constant 0 : index
    %c4 = arith.constant 4 : index
    %c16 = arith.constant 16 : index
    %31 = vector.load %arg6[%c0_15, %c4, %c16] : memref<2x36x256xf32, #tpu.memory_space<vmem>>, vector<2x4x240xf32>
    tpu.vector_store %arg6[%c0_15, %c4, %c16], %30 {strides = array<i32>} : memref<2x36x256xf32, #tpu.memory_space<vmem>>, vector<2x4x240xf32>,
    %c0_16 = arith.constant 0 : index
    %c0_17 = arith.constant 0 : index
    %c0_18 = arith.constant 0 : index
    %32 = vector.load %arg0[%c0_16, %c0_17, %c0_18] : memref<2x4x256xf32, #tpu.memory_space<vmem>>, vector<2x4x241xf32>
    %33 = vector.extract_strided_slice %22 {offsets = [0, 0, 15], sizes = [1, 1, 241], strides = [1, 1, 1]} : vector<1x1x256xi1> to vector<1x1x241xi1>
    %cst_19 = arith.constant 0.000000e+00 : f32
    %34 = vector.shape_cast %33 : vector<1x1x241xi1> to vector<1x1x241xi1>
    %35 = vector.broadcast %34 : vector<1x1x241xi1> to vector<2x4x241xi1>
    %36 = vector.broadcast %cst_19 : f32 to vector<2x4x241xf32>
    %37 = arith.select %35, %32, %36 : vector<2x4x241xi1>, vector<2x4x241xf32>
    %c0_20 = arith.constant 0 : index
    %c8 = arith.constant 8 : index
    %c15 = arith.constant 15 : index
    %38 = vector.load %arg6[%c0_20, %c8, %c15] : memref<2x36x256xf32, #tpu.memory_space<vmem>>, vector<2x4x241xf32>
    tpu.vector_store %arg6[%c0_20, %c8, %c15], %37 {strides = array<i32>} : memref<2x36x256xf32, #tpu.memory_space<vmem>>, vector<2x4x241xf32>,
    %c0_21 = arith.constant 0 : index
    %c0_22 = arith.constant 0 : index
    %c0_23 = arith.constant 0 : index
    %39 = vector.load %arg0[%c0_21, %c0_22, %c0_23] : memref<2x4x256xf32, #tpu.memory_space<vmem>>, vector<2x4x255xf32>
    %40 = vector.extract_strided_slice %20 {offsets = [0, 0, 1], sizes = [1, 1, 255], strides = [1, 1, 1]} : vector<1x1x256xi1> to vector<1x1x255xi1>
    %cst_24 = arith.constant 0.000000e+00 : f32
    %41 = vector.shape_cast %40 : vector<1x1x255xi1> to vector<1x1x255xi1>
    %42 = vector.broadcast %41 : vector<1x1x255xi1> to vector<2x4x255xi1>
    %43 = vector.broadcast %cst_24 : f32 to vector<2x4x255xf32>
    %44 = arith.select %42, %39, %43 : vector<2x4x255xi1>, vector<2x4x255xf32>
    %c0_25 = arith.constant 0 : index
    %c12 = arith.constant 12 : index
    %c1 = arith.constant 1 : index
    %45 = vector.load %arg6[%c0_25, %c12, %c1] : memref<2x36x256xf32, #tpu.memory_space<vmem>>, vector<2x4x255xf32>
    tpu.vector_store %arg6[%c0_25, %c12, %c1], %44 {strides = array<i32>} : memref<2x36x256xf32, #tpu.memory_space<vmem>>, vector<2x4x255xf32>,
    %c0_26 = arith.constant 0 : index
    %c0_27 = arith.constant 0 : index
    %c0_28 = arith.constant 0 : index
    %46 = vector.load %arg0[%c0_26, %c0_27, %c0_28] : memref<2x4x256xf32, #tpu.memory_space<vmem>>, vector<2x4x256xf32>
    %c0_29 = arith.constant 0 : index
    %c16_30 = arith.constant 16 : index
    %c0_31 = arith.constant 0 : index
    %47 = vector.load %arg6[%c0_29, %c16_30, %c0_31] : memref<2x36x256xf32, #tpu.memory_space<vmem>>, vector<2x4x256xf32>
    tpu.vector_store %arg6[%c0_29, %c16_30, %c0_31], %46 {strides = array<i32>} : memref<2x36x256xf32, #tpu.memory_space<vmem>>, vector<2x4x256xf32>,
    %c0_32 = arith.constant 0 : index
    %c0_33 = arith.constant 0 : index
    %c1_34 = arith.constant 1 : index
    %48 = vector.load %arg0[%c0_32, %c0_33, %c1_34] : memref<2x4x256xf32, #tpu.memory_space<vmem>>, vector<2x4x255xf32>
    %49 = vector.extract_strided_slice %22 {offsets = [0, 0, 0], sizes = [1, 1, 255], strides = [1, 1, 1]} : vector<1x1x256xi1> to vector<1x1x255xi1>
    %cst_35 = arith.constant 0.000000e+00 : f32
    %50 = vector.shape_cast %49 : vector<1x1x255xi1> to vector<1x1x255xi1>
    %51 = vector.broadcast %50 : vector<1x1x255xi1> to vector<2x4x255xi1>
    %52 = vector.broadcast %cst_35 : f32 to vector<2x4x255xf32>
    %53 = arith.select %51, %48, %52 : vector<2x4x255xi1>, vector<2x4x255xf32>
    %c0_36 = arith.constant 0 : index
    %c20 = arith.constant 20 : index
    %c0_37 = arith.constant 0 : index
    %54 = vector.load %arg6[%c0_36, %c20, %c0_37] : memref<2x36x256xf32, #tpu.memory_space<vmem>>, vector<2x4x255xf32>
    tpu.vector_store %arg6[%c0_36, %c20, %c0_37], %53 {strides = array<i32>} : memref<2x36x256xf32, #tpu.memory_space<vmem>>, vector<2x4x255xf32>,
    %c0_38 = arith.constant 0 : index
    %c0_39 = arith.constant 0 : index
    %c15_40 = arith.constant 15 : index
    %55 = vector.load %arg0[%c0_38, %c0_39, %c15_40] : memref<2x4x256xf32, #tpu.memory_space<vmem>>, vector<2x4x241xf32>
    %56 = vector.extract_strided_slice %20 {offsets = [0, 0, 0], sizes = [1, 1, 241], strides = [1, 1, 1]} : vector<1x1x256xi1> to vector<1x1x241xi1>
    %cst_41 = arith.constant 0.000000e+00 : f32
    %57 = vector.shape_cast %56 : vector<1x1x241xi1> to vector<1x1x241xi1>
    %58 = vector.broadcast %57 : vector<1x1x241xi1> to vector<2x4x241xi1>
    %59 = vector.broadcast %cst_41 : f32 to vector<2x4x241xf32>
    %60 = arith.select %58, %55, %59 : vector<2x4x241xi1>, vector<2x4x241xf32>
    %c0_42 = arith.constant 0 : index
    %c24 = arith.constant 24 : index
    %c0_43 = arith.constant 0 : index
    %61 = vector.load %arg6[%c0_42, %c24, %c0_43] : memref<2x36x256xf32, #tpu.memory_space<vmem>>, vector<2x4x241xf32>
    tpu.vector_store %arg6[%c0_42, %c24, %c0_43], %60 {strides = array<i32>} : memref<2x36x256xf32, #tpu.memory_space<vmem>>, vector<2x4x241xf32>,
    %c0_44 = arith.constant 0 : index
    %c0_45 = arith.constant 0 : index
    %c16_46 = arith.constant 16 : index
    %62 = vector.load %arg0[%c0_44, %c0_45, %c16_46] : memref<2x4x256xf32, #tpu.memory_space<vmem>>, vector<2x4x240xf32>
    %c0_47 = arith.constant 0 : index
    %c28 = arith.constant 28 : index
    %c0_48 = arith.constant 0 : index
    %63 = vector.load %arg6[%c0_47, %c28, %c0_48] : memref<2x36x256xf32, #tpu.memory_space<vmem>>, vector<2x4x240xf32>
    tpu.vector_store %arg6[%c0_47, %c28, %c0_48], %62 {strides = array<i32>} : memref<2x36x256xf32, #tpu.memory_space<vmem>>, vector<2x4x240xf32>,
    %c0_49 = arith.constant 0 : index
    %c0_50 = arith.constant 0 : index
    %c17_51 = arith.constant 17 : index
    %64 = vector.load %arg0[%c0_49, %c0_50, %c17_51] : memref<2x4x256xf32, #tpu.memory_space<vmem>>, vector<2x4x239xf32>
    %65 = vector.extract_strided_slice %22 {offsets = [0, 0, 0], sizes = [1, 1, 239], strides = [1, 1, 1]} : vector<1x1x256xi1> to vector<1x1x239xi1>
    %cst_52 = arith.constant 0.000000e+00 : f32
    %66 = vector.shape_cast %65 : vector<1x1x239xi1> to vector<1x1x239xi1>
    %67 = vector.broadcast %66 : vector<1x1x239xi1> to vector<2x4x239xi1>
    %68 = vector.broadcast %cst_52 : f32 to vector<2x4x239xf32>
    %69 = arith.select %67, %64, %68 : vector<2x4x239xi1>, vector<2x4x239xf32>
    %c0_53 = arith.constant 0 : index
    %c32 = arith.constant 32 : index
    %c0_54 = arith.constant 0 : index
    %70 = vector.load %arg6[%c0_53, %c32, %c0_54] : memref<2x36x256xf32, #tpu.memory_space<vmem>>, vector<2x4x239xf32>
    tpu.vector_store %arg6[%c0_53, %c32, %c0_54], %69 {strides = array<i32>} : memref<2x36x256xf32, #tpu.memory_space<vmem>>, vector<2x4x239xf32>,
    %c0_55 = arith.constant 0 : index
    %c0_56 = arith.constant 0 : index
    %c0_57 = arith.constant 0 : index
    %71 = vector.load %arg6[%c0_55, %c0_56, %c0_57] : memref<2x36x256xf32, #tpu.memory_space<vmem>>, vector<1x36x256xf32>
    %72 = vector.shape_cast %71 : vector<1x36x256xf32> to vector<36x256xf32>
    %c0_58 = arith.constant 0 : index
    %c0_59 = arith.constant 0 : index
    %73 = vector.load %arg1[%c0_58, %c0_59] : memref<8x36xf32, #tpu.memory_space<vmem>>, vector<8x36xf32>
    %cst_60 = arith.constant dense<0.000000e+00> : vector<8x256xf32>
    %74 = tpu.matmul %73, %72, %cst_60 {dimension_numbers = #tpu.dot_dimension_numbers<[1], [0], [0], [1], [0, 0, 1, 1], [], []>} : vector<8x36xf32>, vector<36x256xf32>, vector<8x256xf32> -> vector<8x256xf32>
    %c0_61 = arith.constant 0 : index
    %c0_62 = arith.constant 0 : index
    %75 = vector.load %arg2[%c0_61, %c0_62] : memref<8x1xf32, #tpu.memory_space<vmem>>, vector<8x1xf32>
    %76 = vector.broadcast %75 : vector<8x1xf32> to vector<8x256xf32>
    %77 = arith.addf %74, %76 : vector<8x256xf32>
    %cst_63 = arith.constant 0.000000e+00 : f32
    %78 = vector.broadcast %cst_63 : f32 to vector<8x256xf32>
    %79 = arith.maximumf %77, %78 : vector<8x256xf32>
    %c0_64 = arith.constant 0 : index
    %c0_65 = arith.constant 0 : index
    %80 = vector.load %arg3[%c0_64, %c0_65] : memref<3x8xf32, #tpu.memory_space<vmem>>, vector<3x8xf32>
    %cst_66 = arith.constant dense<0.000000e+00> : vector<3x256xf32>
    %81 = tpu.matmul %80, %79, %cst_66 {dimension_numbers = #tpu.dot_dimension_numbers<[1], [0], [0], [1], [0, 0, 1, 1], [], []>} : vector<3x8xf32>, vector<8x256xf32>, vector<3x256xf32> -> vector<3x256xf32>
    %c0_67 = arith.constant 0 : index
    %c0_68 = arith.constant 0 : index
    %82 = vector.load %arg4[%c0_67, %c0_68] : memref<3x1xf32, #tpu.memory_space<vmem>>, vector<3x1xf32>
    %83 = vector.broadcast %82 : vector<3x1xf32> to vector<3x256xf32>
    %84 = arith.addf %81, %83 : vector<3x256xf32>
    %c0_69 = arith.constant 0 : index
    %c0_70 = arith.constant 0 : index
    %c0_71 = arith.constant 0 : index
    %85 = vector.load %arg5[%c0_69, %c0_70, %c0_71] : memref<2x3x256xf32, #tpu.memory_space<vmem>>, vector<1x3x256xf32>
    %86 = vector.shape_cast %85 : vector<1x3x256xf32> to vector<3x256xf32>
    %87 = vector.shape_cast %84 : vector<3x256xf32> to vector<1x3x256xf32>
    tpu.vector_store %arg5[%c0_69, %c0_70, %c0_71], %87 {strides = array<i32>} : memref<2x3x256xf32, #tpu.memory_space<vmem>>, vector<1x3x256xf32>,
    %c1_72 = arith.constant 1 : index
    %c0_73 = arith.constant 0 : index
    %c0_74 = arith.constant 0 : index
    %88 = vector.load %arg6[%c1_72, %c0_73, %c0_74] : memref<2x36x256xf32, #tpu.memory_space<vmem>>, vector<1x36x256xf32>
    %89 = vector.shape_cast %88 : vector<1x36x256xf32> to vector<36x256xf32>
    %c0_75 = arith.constant 0 : index
    %c0_76 = arith.constant 0 : index
    %90 = vector.load %arg1[%c0_75, %c0_76] : memref<8x36xf32, #tpu.memory_space<vmem>>, vector<8x36xf32>
    %cst_77 = arith.constant dense<0.000000e+00> : vector<8x256xf32>
    %91 = tpu.matmul %90, %89, %cst_77 {dimension_numbers = #tpu.dot_dimension_numbers<[1], [0], [0], [1], [0, 0, 1, 1], [], []>} : vector<8x36xf32>, vector<36x256xf32>, vector<8x256xf32> -> vector<8x256xf32>
    %c0_78 = arith.constant 0 : index
    %c0_79 = arith.constant 0 : index
    %92 = vector.load %arg2[%c0_78, %c0_79] : memref<8x1xf32, #tpu.memory_space<vmem>>, vector<8x1xf32>
    %93 = vector.broadcast %92 : vector<8x1xf32> to vector<8x256xf32>
    %94 = arith.addf %91, %93 : vector<8x256xf32>
    %cst_80 = arith.constant 0.000000e+00 : f32
    %95 = vector.broadcast %cst_80 : f32 to vector<8x256xf32>
    %96 = arith.maximumf %94, %95 : vector<8x256xf32>
    %c0_81 = arith.constant 0 : index
    %c0_82 = arith.constant 0 : index
    %97 = vector.load %arg3[%c0_81, %c0_82] : memref<3x8xf32, #tpu.memory_space<vmem>>, vector<3x8xf32>
    %cst_83 = arith.constant dense<0.000000e+00> : vector<3x256xf32>
    %98 = tpu.matmul %97, %96, %cst_83 {dimension_numbers = #tpu.dot_dimension_numbers<[1], [0], [0], [1], [0, 0, 1, 1], [], []>} : vector<3x8xf32>, vector<8x256xf32>, vector<3x256xf32> -> vector<3x256xf32>
    %c0_84 = arith.constant 0 : index
    %c0_85 = arith.constant 0 : index
    %99 = vector.load %arg4[%c0_84, %c0_85] : memref<3x1xf32, #tpu.memory_space<vmem>>, vector<3x1xf32>
    %100 = vector.broadcast %99 : vector<3x1xf32> to vector<3x256xf32>
    %101 = arith.addf %98, %100 : vector<3x256xf32>
    %c1_86 = arith.constant 1 : index
    %c0_87 = arith.constant 0 : index
    %c0_88 = arith.constant 0 : index
    %102 = vector.load %arg5[%c1_86, %c0_87, %c0_88] : memref<2x3x256xf32, #tpu.memory_space<vmem>>, vector<1x3x256xf32>
    %103 = vector.shape_cast %102 : vector<1x3x256xf32> to vector<3x256xf32>
    %104 = vector.shape_cast %101 : vector<3x256xf32> to vector<1x3x256xf32>
    tpu.vector_store %arg5[%c1_86, %c0_87, %c0_88], %104 {strides = array<i32>} : memref<2x3x256xf32, #tpu.memory_space<vmem>>, vector<1x3x256xf32>,
    return
  }
}

</mosaic_0001>

<llo_original>
// kernel: single_task_backbone.1
$region0: #{single_task_backbone.1}
  #allocation0 [shape = 'u32[]', space=smem, size = 0x4, offset = 0x4, fixed_abs, tag = 'smem constant byte address 0x4 - core index']
  #allocation1 [shape = 'u32[144,128]{1,0:T(1,128)}', space=vmem, size = 0x12000, scoped, tag = 'internal scratch']
  #allocation2 [shape = 'f32[2,36,256]{2,1,0:T(8,128)}', space=vmem, size = 0x14000, scoped, tag = 'scratch operand']
  %s0 = inlined_call_operand.vmem [shape: f32[2,4,256], index: 0, kind: input, shape index: {}]
  %s1 = inlined_call_operand.vmem [shape: f32[8,36], index: 1, kind: input, shape index: {}]
  %s2 = inlined_call_operand.vmem [shape: f32[8,1], index: 2, kind: input, shape index: {}]
  %s3 = inlined_call_operand.vmem [shape: f32[3,8], index: 3, kind: input, shape index: {}]
  %s4 = inlined_call_operand.vmem [shape: f32[3,1], index: 4, kind: input, shape index: {}]
  %s5 = inlined_call_operand.vmem [shape: f32[2,3,256], index: 5, kind: output, shape index: {}]
  %s6 = sld [smem:[#allocation0]]
  $region30: #{single_task_backbone.1} parent=0
    _
  %s8 = ssub.s32 1, %s6
  %s9 = scalar_select 0, %s8, %s6
  // Predicated region
  $region2: #{single_task_backbone.1} parent=0 // pred_check
    _
  $region3: #{single_task_backbone.1} parent=0 // pred_check_branch
    %11 = sbr.rel (0) target = $region5
  $region4: #{single_task_backbone.1} parent=0 // pred_region
    _
  $region5: #{single_task_backbone.1} parent=0 // pred_fallthru
    _
  // Predicated region
  $region6: #{single_task_backbone.1} parent=0 // pred_check
    _
  $region7: #{single_task_backbone.1} parent=0 // pred_check_branch
    %13 = sbr.rel (0) target = $region9
  $region8: #{single_task_backbone.1} parent=0 // pred_region
    _
  $region9: #{single_task_backbone.1} parent=0 // pred_fallthru
    _
  // Predicated region
  $region10: #{single_task_backbone.1} parent=0 // pred_check
    _
  $region11: #{single_task_backbone.1} parent=0 // pred_check_branch
    %15 = sbr.rel (0) target = $region13
  $region12: #{single_task_backbone.1} parent=0 // pred_region
    _
  $region13: #{single_task_backbone.1} parent=0 // pred_fallthru
    _
  // Predicated region
  $region14: #{single_task_backbone.1} parent=0 // pred_check
    _
  $region15: #{single_task_backbone.1} parent=0 // pred_check_branch
    %17 = sbr.rel (0) target = $region17
  $region16: #{single_task_backbone.1} parent=0 // pred_region
    _
  $region17: #{single_task_backbone.1} parent=0 // pred_fallthru
    _
  // Predicated region
  $region18: #{single_task_backbone.1} parent=0 // pred_check
    _
  $region19: #{single_task_backbone.1} parent=0 // pred_check_branch
    %19 = sbr.rel (0) target = $region21
  $region20: #{single_task_backbone.1} parent=0 // pred_region
    _
  $region21: #{single_task_backbone.1} parent=0 // pred_fallthru
    _
  %20 = vst [vmem:[#allocation2] sm:$0xff] 0.0
  %21 = vst [vmem:[#allocation2 + $0x8] sm:$0xff] 0.0
  %22 = vst [vmem:[#allocation2 + $0x10] sm:$0xff] 0.0
  %23 = vst [vmem:[#allocation2 + $0x18] sm:$0xff] 0.0
  %24 = vst [vmem:[#allocation2 + $0x20] sm:$0xff] 0.0
  %25 = vst [vmem:[#allocation2 + $0x28] sm:$0xff] 0.0
  %26 = vst [vmem:[#allocation2 + $0x30] sm:$0xff] 0.0
  %27 = vst [vmem:[#allocation2 + $0x38] sm:$0xff] 0.0
  %28 = vst [vmem:[#allocation2 + $0x40] sm:$0xf] 0.0
  %29 = vst [vmem:[#allocation2 + $0x48] sm:$0xf] 0.0
  %30 = vst [vmem:[#allocation2 + $0x50] sm:$0xff] 0.0
  %31 = vst [vmem:[#allocation2 + $0x58] sm:$0xff] 0.0
  %32 = vst [vmem:[#allocation2 + $0x60] sm:$0xff] 0.0
  %33 = vst [vmem:[#allocation2 + $0x68] sm:$0xff] 0.0
  %34 = vst [vmem:[#allocation2 + $0x70] sm:$0xff] 0.0
  %35 = vst [vmem:[#allocation2 + $0x78] sm:$0xff] 0.0
  %36 = vst [vmem:[#allocation2 + $0x80] sm:$0xff] 0.0
  %37 = vst [vmem:[#allocation2 + $0x88] sm:$0xff] 0.0
  %38 = vst [vmem:[#allocation2 + $0x90] sm:$0xf] 0.0
  %39 = vst [vmem:[#allocation2 + $0x98] sm:$0xf] 0.0
  %v40 = vlaneseq
  %v41 = vand.u32 %v40, 127
  %v42 = vadd.s32 %v41, 128
  %vm43 = vcmp.lt.s32.totalorder %v41, 0
  %v44 = vsub.s32 0, %v41
  %v45 = vsel %vm43, %v44, %v41
  %v46 = vshrl.u32 %v45, 4
  %v47 = vand.u32 %v45, 15
  %v48 = vsub.s32 0, %v47
  %v49 = vsel %vm43, %v48, %v47
  %vm50 = vcmp.lt.s32.totalorder %v42, 0
  %v51 = vsub.s32 0, %v42
  %v52 = vsel %vm50, %v51, %v42
  %v53 = vshrl.u32 %v52, 4
  %v54 = vand.u32 %v52, 15
  %v55 = vsub.s32 0, %v54
  %v56 = vsel %vm50, %v55, %v54
  %vm57 = vcmp.ne.s32.totalorder %v49, 0
  %vm58 = vcmp.ne.s32.totalorder %v56, 0
  %vm59 = vcmp.lt.s32.totalorder %v49, 0
  %vm60 = vcmp.lt.s32.totalorder %v56, 0
  %vm61 = vmand %vm59, %vm57
  %vm62 = vmand %vm60, %vm58
  %v63 = vadd.s32 %v49, 16
  %v64 = vadd.s32 %v56, 16
  %v65 = vsel %vm61, %v63, %v49
  %v66 = vsel %vm62, %v64, %v56
  %vm67 = vcmp.gt.s32.totalorder %v65, 0
  %vm68 = vcmp.gt.s32.totalorder %v66, 0
  %vm69 = vcmp.lt.s32.totalorder %v65, 15
  %vm70 = vcmp.lt.s32.totalorder %v66, 15
  %v71 = vld [vmem:[%s0] sm:$0xff]
  %v72 = vld [vmem:[%s0 + $0x8] sm:$0xff]
  %v73 = vsel %vm67, 1, 0
  %v74 = vsel %vm68, 1, 0
  %vm75 = vcmp.eq.s32.totalorder %v73, 1
  %vm76 = vcmp.eq.s32.totalorder %v74, 1
  %v79 = vcombine.high %v71, %v71
  %v80 = vcombine.high %v72, %v72
  %81 = vrot.lane.b32.xlu0 %v71, 17
  %v82 = vpop.permute.xlu0 %81
  %83 = vrot.lane.b32.xlu0 %v79, 17
  %v84 = vpop.permute.xlu0 %83
  %85 = vrot.lane.b32.xlu0 %v72, 17
  %v86 = vpop.permute.xlu0 %85
  %87 = vrot.lane.b32.xlu0 %v80, 17
  %v88 = vpop.permute.xlu0 %87
  %vm89 = vcmask 138240
  %v90 = vsel %vm89, %v82, %v84
  %v91 = vsel %vm89, %v86, %v88
  %v96 = vsel %vm75, %v82, 0.0
  %v97 = vsel %vm76, %v90, 0.0
  %v98 = vsel %vm75, %v86, 0.0
  %v99 = vsel %vm76, %v91, 0.0
  %vm100 = vcmask 1043592
  %101 = vst.msk [vmem:[#allocation2] sm:$0xf] %vm100, %v96
  %102 = vst [vmem:[#allocation2 + $0x8] sm:$0xf] %v97
  %103 = vst.msk [vmem:[#allocation2 + $0x50] sm:$0xf] %vm100, %v98
  %104 = vst [vmem:[#allocation2 + $0x58] sm:$0xf] %v99
  %v105 = vld [vmem:[%s0] sm:$0xff]
  %v106 = vld [vmem:[%s0 + $0x8] sm:$0xff]
  %v109 = vcombine.low %v105, %v105
  %v110 = vcombine.low %v106, %v106
  %111 = vrot.lane.b32.xlu0 %v109, 16
  %v112 = vpop.permute.xlu0 %111
  %113 = vrot.lane.b32.xlu0 %v105, 16
  %v114 = vpop.permute.xlu0 %113
  %115 = vrot.lane.b32.xlu0 %v110, 16
  %v116 = vpop.permute.xlu0 %115
  %117 = vrot.lane.b32.xlu0 %v106, 16
  %v118 = vpop.permute.xlu0 %117
  %vm119 = vcmask 130048
  %v120 = vsel %vm119, %v112, %v114
  %v121 = vsel %vm119, %v116, %v118
  %vm126 = vcmask 1047684
  %127 = vst.msk [vmem:[#allocation2] sm:$0xf0] %vm126, %v112
  %128 = vst [vmem:[#allocation2 + $0x8] sm:$0xf0] %v120
  %129 = vst.msk [vmem:[#allocation2 + $0x50] sm:$0xf0] %vm126, %v116
  %130 = vst [vmem:[#allocation2 + $0x58] sm:$0xf0] %v121
  %v131 = vld [vmem:[%s0] sm:$0xff]
  %v132 = vld [vmem:[%s0 + $0x8] sm:$0xff]
  %v133 = vsel %vm69, 1, 0
  %v134 = vsel %vm70, 1, 0
  %vm135 = vcmp.eq.s32.totalorder %v133, 1
  %vm136 = vcmp.eq.s32.totalorder %v134, 1
  %v139 = vcombine.high %v131, %v131
  %v140 = vcombine.high %v132, %v132
  %141 = vrot.lane.b32.xlu0 %v131, 15
  %v142 = vpop.permute.xlu0 %141
  %143 = vrot.lane.b32.xlu0 %v139, 15
  %v144 = vpop.permute.xlu0 %143
  %145 = vrot.lane.b32.xlu0 %v132, 15
  %v146 = vpop.permute.xlu0 %145
  %147 = vrot.lane.b32.xlu0 %v140, 15
  %v148 = vpop.permute.xlu0 %147
  %vm149 = vcmask 121856
  %v150 = vsel %vm149, %v142, %v144
  %v151 = vsel %vm149, %v146, %v148
  %v156 = vsel %vm135, %v142, 0.0
  %v157 = vsel %vm136, %v150, 0.0
  %v158 = vsel %vm135, %v146, 0.0
  %v159 = vsel %vm136, %v151, 0.0
  %vm160 = vcmask 1043576
  %161 = vst.msk [vmem:[#allocation2 + $0x10] sm:$0xf] %vm160, %v156
  %162 = vst [vmem:[#allocation2 + $0x18] sm:$0xf] %v157
  %163 = vst.msk [vmem:[#allocation2 + $0x60] sm:$0xf] %vm160, %v158
  %164 = vst [vmem:[#allocation2 + $0x68] sm:$0xf] %v159
  %v165 = vld [vmem:[%s0] sm:$0xff]
  %v166 = vld [vmem:[%s0 + $0x8] sm:$0xff]
  %v169 = vcombine.high %v165, %v165
  %v170 = vcombine.high %v166, %v166
  %171 = vrot.lane.b32.xlu0 %v165, 1
  %v172 = vpop.permute.xlu0 %171
  %173 = vrot.lane.b32.xlu0 %v169, 1
  %v174 = vpop.permute.xlu0 %173
  %175 = vrot.lane.b32.xlu0 %v166, 1
  %v176 = vpop.permute.xlu0 %175
  %177 = vrot.lane.b32.xlu0 %v170, 1
  %v178 = vpop.permute.xlu0 %177
  %vm179 = vcmask 7168
  %v180 = vsel %vm179, %v172, %v174
  %v181 = vsel %vm179, %v176, %v178
  %v186 = vsel %vm75, %v172, 0.0
  %v187 = vsel %vm76, %v180, 0.0
  %v188 = vsel %vm75, %v176, 0.0
  %v189 = vsel %vm76, %v181, 0.0
  %v194 = vrot.slane %v186, 4
  %v195 = vrot.slane %v187, 4
  %v196 = vrot.slane %v188, 4
  %v197 = vrot.slane %v189, 4
  %vm202 = vcmask 1047564
  %203 = vst.msk [vmem:[#allocation2 + $0x10] sm:$0xf0] %vm202, %v194
  %204 = vst [vmem:[#allocation2 + $0x18] sm:$0xf0] %v195
  %205 = vst.msk [vmem:[#allocation2 + $0x60] sm:$0xf0] %vm202, %v196
  %206 = vst [vmem:[#allocation2 + $0x68] sm:$0xf0] %v197
  %v207 = vld [vmem:[%s0] sm:$0xff]
  %v208 = vld [vmem:[%s0 + $0x8] sm:$0xff]
  %v211 = vcombine.high %v207, %v207
  %v212 = vcombine.high %v208, %v208
  %215 = vst [vmem:[#allocation2 + $0x20] sm:$0xf] %v207
  %216 = vst [vmem:[#allocation2 + $0x28] sm:$0xf] %v211
  %217 = vst [vmem:[#allocation2 + $0x70] sm:$0xf] %v208
  %218 = vst [vmem:[#allocation2 + $0x78] sm:$0xf] %v212
  %v219 = vld [vmem:[%s0] sm:$0xff]
  %v220 = vld [vmem:[%s0 + $0x8] sm:$0xff]
  %v223 = vcombine.high %v219, %v219
  %v224 = vcombine.high %v220, %v220
  %225 = vrot.lane.b32.xlu0 %v219, 127
  %v226 = vpop.permute.xlu0 %225
  %227 = vrot.lane.b32.xlu0 %v223, 127
  %v228 = vpop.permute.xlu0 %227
  %229 = vrot.lane.b32.xlu0 %v220, 127
  %v230 = vpop.permute.xlu0 %229
  %231 = vrot.lane.b32.xlu0 %v224, 127
  %v232 = vpop.permute.xlu0 %231
  %vm233 = vcmask 1039360
  %v234 = vsel %vm233, %v226, %v228
  %v235 = vsel %vm233, %v230, %v232
  %v240 = vsel %vm135, %v234, 0.0
  %v241 = vsel %vm136, %v228, 0.0
  %v242 = vsel %vm135, %v235, 0.0
  %v243 = vsel %vm136, %v232, 0.0
  %v248 = vrot.slane %v240, 4
  %v249 = vrot.slane %v241, 4
  %v250 = vrot.slane %v242, 4
  %v251 = vrot.slane %v243, 4
  %256 = vst [vmem:[#allocation2 + $0x20] sm:$0xf0] %v248
  %vm257 = vcmask 1039364
  %258 = vst.msk [vmem:[#allocation2 + $0x28] sm:$0xf0] %vm257, %v249
  %259 = vst [vmem:[#allocation2 + $0x70] sm:$0xf0] %v250
  %260 = vst.msk [vmem:[#allocation2 + $0x78] sm:$0xf0] %vm257, %v251
  %v261 = vld [vmem:[%s0] sm:$0xff]
  %v262 = vld [vmem:[%s0 + $0x8] sm:$0xff]
  %v265 = vcombine.high %v261, %v261
  %v266 = vcombine.high %v262, %v262
  %267 = vrot.lane.b32.xlu0 %v261, 113
  %v268 = vpop.permute.xlu0 %267
  %269 = vrot.lane.b32.xlu0 %v265, 113
  %v270 = vpop.permute.xlu0 %269
  %271 = vrot.lane.b32.xlu0 %v262, 113
  %v272 = vpop.permute.xlu0 %271
  %273 = vrot.lane.b32.xlu0 %v266, 113
  %v274 = vpop.permute.xlu0 %273
  %vm275 = vcmask 924672
  %v276 = vsel %vm275, %v268, %v270
  %v277 = vsel %vm275, %v272, %v274
  %v282 = vsel %vm75, %v276, 0.0
  %v283 = vsel %vm76, %v270, 0.0
  %v284 = vsel %vm75, %v277, 0.0
  %v285 = vsel %vm76, %v274, 0.0
  %286 = vst [vmem:[#allocation2 + $0x30] sm:$0xf] %v282
  %vm287 = vcmask 920576
  %288 = vst.msk [vmem:[#allocation2 + $0x38] sm:$0xf] %vm287, %v283
  %289 = vst [vmem:[#allocation2 + $0x80] sm:$0xf] %v284
  %290 = vst.msk [vmem:[#allocation2 + $0x88] sm:$0xf] %vm287, %v285
  %v291 = vld [vmem:[%s0] sm:$0xff]
  %v292 = vld [vmem:[%s0 + $0x8] sm:$0xff]
  %v295 = vcombine.low %v291, %v291
  %v296 = vcombine.low %v292, %v292
  %297 = vrot.lane.b32.xlu0 %v295, 112
  %v298 = vpop.permute.xlu0 %297
  %299 = vrot.lane.b32.xlu0 %v291, 112
  %v300 = vpop.permute.xlu0 %299
  %301 = vrot.lane.b32.xlu0 %v296, 112
  %v302 = vpop.permute.xlu0 %301
  %303 = vrot.lane.b32.xlu0 %v292, 112
  %v304 = vpop.permute.xlu0 %303
  %vm305 = vcmask 916480
  %v306 = vsel %vm305, %v298, %v300
  %v307 = vsel %vm305, %v302, %v304
  %312 = vst [vmem:[#allocation2 + $0x30] sm:$0xf0] %v306
  %vm313 = vcmask 916484
  %314 = vst.msk [vmem:[#allocation2 + $0x38] sm:$0xf0] %vm313, %v300
  %315 = vst [vmem:[#allocation2 + $0x80] sm:$0xf0] %v307
  %316 = vst.msk [vmem:[#allocation2 + $0x88] sm:$0xf0] %vm313, %v304
  %v317 = vld [vmem:[%s0] sm:$0xff]
  %v318 = vld [vmem:[%s0 + $0x8] sm:$0xff]
  %v321 = vcombine.high %v317, %v317
  %v322 = vcombine.high %v318, %v318
  %323 = vrot.lane.b32.xlu0 %v317, 111
  %v324 = vpop.permute.xlu0 %323
  %325 = vrot.lane.b32.xlu0 %v321, 111
  %v326 = vpop.permute.xlu0 %325
  %327 = vrot.lane.b32.xlu0 %v318, 111
  %v328 = vpop.permute.xlu0 %327
  %329 = vrot.lane.b32.xlu0 %v322, 111
  %v330 = vpop.permute.xlu0 %329
  %vm331 = vcmask 908288
  %v332 = vsel %vm331, %v324, %v326
  %v333 = vsel %vm331, %v328, %v330
  %v338 = vsel %vm135, %v332, 0.0
  %v339 = vsel %vm136, %v326, 0.0
  %v340 = vsel %vm135, %v333, 0.0
  %v341 = vsel %vm136, %v330, 0.0
  %342 = vst [vmem:[#allocation2 + $0x40] sm:$0xf] %v338
  %vm343 = vcmask 904192
  %344 = vst.msk [vmem:[#allocation2 + $0x48] sm:$0xf] %vm343, %v339
  %345 = vst [vmem:[#allocation2 + $0x90] sm:$0xf] %v340
  %346 = vst.msk [vmem:[#allocation2 + $0x98] sm:$0xf] %vm343, %v341
  %v347 = vld [vmem:[#allocation2] sm:$0xff]
  %v348 = vld [vmem:[#allocation2 + $0x8] sm:$0xff]
  %v349 = vld [vmem:[#allocation2 + $0x10] sm:$0xff]
  %v350 = vld [vmem:[#allocation2 + $0x18] sm:$0xff]
  %v351 = vld [vmem:[#allocation2 + $0x20] sm:$0xff]
  %v352 = vld [vmem:[#allocation2 + $0x28] sm:$0xff]
  %v353 = vld [vmem:[#allocation2 + $0x30] sm:$0xff]
  %v354 = vld [vmem:[#allocation2 + $0x38] sm:$0xff]
  %v355 = vld [vmem:[#allocation2 + $0x40] sm:$0xf]
  %v356 = vld [vmem:[#allocation2 + $0x48] sm:$0xf]
  %v357 = vld [vmem:[%s1] sm:$0xff]
  %v358 = vld [vmem:[%s2] sm:$0xff]
  %360 = vset.pattern.permute.xlu0 0
  %361 = vperm.xlu0 %360, %v358
  %v362 = vpop.permute.xlu0 %361
  %vm364 = vcmask 293888
  %v366 = vsel %vm364, %v357, 0
  %vm368 = vcmask 1043456
  %v370 = vsel %vm368, %v355, 0
  %v373 = vsel %vm368, %v356, 0
  %375 = vmatprep.subr.mxu0 %v348
  %376 = vmatpush1.msra.mxu0 %v347
  %377 = vmatprep.subr.mxu0 %v350
  %378 = vmatpush1.msra.mxu0 %v349
  %379 = vmatprep.subr.mxu0 %v352
  %380 = vmatpush1.msra.mxu0 %v351
  %381 = vmatprep.subr.mxu0 %v354
  %382 = vmatpush1.msra.mxu0 %v353
  %383 = vmatprep.subr.mxu0 %v373
  %384 = vmatpush1.msra.mxu0 %v370
  %385 = vmatprep.subr.mxu0 0.0
  %386 = vmatpush1.msra.mxu0 0.0
  %387 = vmatprep.subr.mxu0 0.0
  %388 = vmatpush1.msra.mxu0 0.0
  %389 = vmatprep.subr.mxu0 0.0
  %390 = vmatpush1.msra.mxu0 0.0
  %391 = vmatprep.subr.mxu0 0.0
  %392 = vmatpush1.msra.mxu0 0.0
  %393 = vmatprep.subr.mxu0 0.0
  %394 = vmatpush1.msra.mxu0 0.0
  %395 = vmatprep.subr.mxu0 0.0
  %396 = vmatpush1.msra.mxu0 0.0
  %397 = vmatprep.subr.mxu0 0.0
  %398 = vmatpush1.msra.mxu0 0.0
  %399 = vmatprep.subr.mxu0 0.0
  %400 = vmatpush1.msra.mxu0 0.0
  %401 = vmatprep.subr.mxu0 0.0
  %402 = vmatpush1.msra.mxu0 0.0
  %403 = vmatprep.subr.mxu0 0.0
  %404 = vmatpush1.msra.mxu0 0.0
  %405 = vmatprep.subr.mxu0 0.0
  %406 = vmatpush1.msra.mxu0 0.0
  %407 = vmatprep.subr.mxu0 0.0
  %408 = vmatpush1.msra.mxu0 0.0
  %409 = vmatprep.subr.mxu0 0.0
  %410 = vmatpush1.msra.mxu0 0.0
  %411 = vmatprep.subr.mxu0 0.0
  %412 = vmatpush1.msra.mxu0 0.0
  %413 = vmatprep.subr.mxu0 0.0
  %414 = vmatpush1.msra.mxu0 0.0
  %415 = vmatprep.subr.mxu0 0.0
  %416 = vmatpush1.msra.mxu0 0.0
  %417 = vmatprep.subr.mxu0 0.0
  %418 = vmatpush1.msra.mxu0 0.0
  %419 = vmatprep.subr.mxu0 0.0
  %420 = vmatpush1.msra.mxu0 0.0
  %421 = vmatprep.subr.mxu0 0.0
  %422 = vmatpush1.msra.mxu0 0.0
  %423 = vmatprep.subr.mxu0 0.0
  %424 = vmatpush1.msra.mxu0 0.0
  %425 = vmatprep.subr.mxu0 0.0
  %426 = vmatpush1.msra.mxu0 0.0
  %427 = vmatprep.subr.mxu0 0.0
  %428 = vmatpush1.msra.mxu0 0.0
  %429 = vmatprep.subr.mxu0 0.0
  %430 = vmatpush1.msra.mxu0 0.0
  %431 = vmatprep.subr.mxu0 0.0
  %432 = vmatpush1.msra.mxu0 0.0
  %433 = vmatprep.subr.mxu0 0.0
  %434 = vmatpush1.msra.mxu0 0.0
  %435 = vmatprep.subr.mxu0 0.0
  %436 = vmatpush1.msra.mxu0 0.0
  %437 = vmatprep.subr.mxu0 0.0
  %438 = vmatpush1.msra.mxu0 0.0
  %439 = vmatprep.mubr.f32.mxu0 0.0
  %440 = vmatmul.mubr.f32.gmra.mrb[0].mxu0 %v366
  %v441 = vpop.f32.mrb[0].mxu0
  %v442 = vadd.f32 %v362, %v441
  %v443 = vpop.f32.mrb[0].mxu0
  %v444 = vadd.f32 %v362, %v443
  %445 = vdwg.mxu0
  %v446 = vmax.f32 %v442, 0.0
  %v447 = vmax.f32 %v444, 0.0
  %v448 = vld [vmem:[%s3] sm:$0x7]
  %v449 = vld [vmem:[%s4] sm:$0x7]
  %451 = vset.pattern.permute.xlu0 0
  %452 = vperm.xlu0 %451, %v449
  %v453 = vpop.permute.xlu0 %452
  %vm455 = vcmask 64512
  %v457 = vsel %vm455, %v448, 0
  %459 = vmatprep.subr.mxu0 %v447
  %460 = vmatpush1.msra.mxu0 %v446
  %461 = vmatprep.subr.mxu0 0.0
  %462 = vmatpush1.msra.mxu0 0.0
  %463 = vmatprep.subr.mxu0 0.0
  %464 = vmatpush1.msra.mxu0 0.0
  %465 = vmatprep.subr.mxu0 0.0
  %466 = vmatpush1.msra.mxu0 0.0
  %467 = vmatprep.subr.mxu0 0.0
  %468 = vmatpush1.msra.mxu0 0.0
  %469 = vmatprep.subr.mxu0 0.0
  %470 = vmatpush1.msra.mxu0 0.0
  %471 = vmatprep.subr.mxu0 0.0
  %472 = vmatpush1.msra.mxu0 0.0
  %473 = vmatprep.subr.mxu0 0.0
  %474 = vmatpush1.msra.mxu0 0.0
  %475 = vmatprep.subr.mxu0 0.0
  %476 = vmatpush1.msra.mxu0 0.0
  %477 = vmatprep.subr.mxu0 0.0
  %478 = vmatpush1.msra.mxu0 0.0
  %479 = vmatprep.subr.mxu0 0.0
  %480 = vmatpush1.msra.mxu0 0.0
  %481 = vmatprep.subr.mxu0 0.0
  %482 = vmatpush1.msra.mxu0 0.0
  %483 = vmatprep.subr.mxu0 0.0
  %484 = vmatpush1.msra.mxu0 0.0
  %485 = vmatprep.subr.mxu0 0.0
  %486 = vmatpush1.msra.mxu0 0.0
  %487 = vmatprep.subr.mxu0 0.0
  %488 = vmatpush1.msra.mxu0 0.0
  %489 = vmatprep.subr.mxu0 0.0
  %490 = vmatpush1.msra.mxu0 0.0
  %491 = vmatprep.subr.mxu0 0.0
  %492 = vmatpush1.msra.mxu0 0.0
  %493 = vmatprep.subr.mxu0 0.0
  %494 = vmatpush1.msra.mxu0 0.0
  %495 = vmatprep.subr.mxu0 0.0
  %496 = vmatpush1.msra.mxu0 0.0
  %497 = vmatprep.subr.mxu0 0.0
  %498 = vmatpush1.msra.mxu0 0.0
  %499 = vmatprep.subr.mxu0 0.0
  %500 = vmatpush1.msra.mxu0 0.0
  %501 = vmatprep.subr.mxu0 0.0
  %502 = vmatpush1.msra.mxu0 0.0
  %503 = vmatprep.subr.mxu0 0.0
  %504 = vmatpush1.msra.mxu0 0.0
  %505 = vmatprep.subr.mxu0 0.0
  %506 = vmatpush1.msra.mxu0 0.0
  %507 = vmatprep.subr.mxu0 0.0
  %508 = vmatpush1.msra.mxu0 0.0
  %509 = vmatprep.subr.mxu0 0.0
  %510 = vmatpush1.msra.mxu0 0.0
  %511 = vmatprep.subr.mxu0 0.0
  %512 = vmatpush1.msra.mxu0 0.0
  %513 = vmatprep.subr.mxu0 0.0
  %514 = vmatpush1.msra.mxu0 0.0
  %515 = vmatprep.subr.mxu0 0.0
  %516 = vmatpush1.msra.mxu0 0.0
  %517 = vmatprep.subr.mxu0 0.0
  %518 = vmatpush1.msra.mxu0 0.0
  %519 = vmatprep.subr.mxu0 0.0
  %520 = vmatpush1.msra.mxu0 0.0
  %521 = vmatprep.subr.mxu0 0.0
  %522 = vmatpush1.msra.mxu0 0.0
  %523 = vmatprep.mubr.f32.mxu0 0.0
  %524 = vmatmul.mubr.f32.gmra.mrb[0].mxu0 %v457
  %v525 = vpop.f32.mrb[0].mxu0
  %v526 = vadd.f32 %v453, %v525
  %v527 = vpop.f32.mrb[0].mxu0
  %v528 = vadd.f32 %v453, %v527
  %529 = vdwg.mxu0
  %v532 = vcombine.low %v526, %v528
  %534 = vst [vmem:[%s5] sm:$0x77] %v532
  %s535 = scalar_lea.vmem [#allocation2], 80
  %v536 = vld [vmem:[%s535] sm:$0xff]
  %v537 = vld [vmem:[%s535 + $0x8] sm:$0xff]
  %v538 = vld [vmem:[%s535 + $0x10] sm:$0xff]
  %v539 = vld [vmem:[%s535 + $0x18] sm:$0xff]
  %v540 = vld [vmem:[%s535 + $0x20] sm:$0xff]
  %v541 = vld [vmem:[%s535 + $0x28] sm:$0xff]
  %v542 = vld [vmem:[%s535 + $0x30] sm:$0xff]
  %v543 = vld [vmem:[%s535 + $0x38] sm:$0xff]
  %v544 = vld [vmem:[%s535 + $0x40] sm:$0xf]
  %v545 = vld [vmem:[%s535 + $0x48] sm:$0xf]
  %v546 = vld [vmem:[%s1] sm:$0xff]
  %v547 = vld [vmem:[%s2] sm:$0xff]
  %549 = vset.pattern.permute.xlu0 0
  %550 = vperm.xlu0 %549, %v547
  %v551 = vpop.permute.xlu0 %550
  %v554 = vsel %vm364, %v546, 0
  %v557 = vsel %vm368, %v544, 0
  %v560 = vsel %vm368, %v545, 0
  %562 = vmatprep.subr.mxu0 %v537
  %563 = vmatpush1.msra.mxu0 %v536
  %564 = vmatprep.subr.mxu0 %v539
  %565 = vmatpush1.msra.mxu0 %v538
  %566 = vmatprep.subr.mxu0 %v541
  %567 = vmatpush1.msra.mxu0 %v540
  %568 = vmatprep.subr.mxu0 %v543
  %569 = vmatpush1.msra.mxu0 %v542
  %570 = vmatprep.subr.mxu0 %v560
  %571 = vmatpush1.msra.mxu0 %v557
  %572 = vmatprep.subr.mxu0 0.0
  %573 = vmatpush1.msra.mxu0 0.0
  %574 = vmatprep.subr.mxu0 0.0
  %575 = vmatpush1.msra.mxu0 0.0
  %576 = vmatprep.subr.mxu0 0.0
  %577 = vmatpush1.msra.mxu0 0.0
  %578 = vmatprep.subr.mxu0 0.0
  %579 = vmatpush1.msra.mxu0 0.0
  %580 = vmatprep.subr.mxu0 0.0
  %581 = vmatpush1.msra.mxu0 0.0
  %582 = vmatprep.subr.mxu0 0.0
  %583 = vmatpush1.msra.mxu0 0.0
  %584 = vmatprep.subr.mxu0 0.0
  %585 = vmatpush1.msra.mxu0 0.0
  %586 = vmatprep.subr.mxu0 0.0
  %587 = vmatpush1.msra.mxu0 0.0
  %588 = vmatprep.subr.mxu0 0.0
  %589 = vmatpush1.msra.mxu0 0.0
  %590 = vmatprep.subr.mxu0 0.0
  %591 = vmatpush1.msra.mxu0 0.0
  %592 = vmatprep.subr.mxu0 0.0
  %593 = vmatpush1.msra.mxu0 0.0
  %594 = vmatprep.subr.mxu0 0.0
  %595 = vmatpush1.msra.mxu0 0.0
  %596 = vmatprep.subr.mxu0 0.0
  %597 = vmatpush1.msra.mxu0 0.0
  %598 = vmatprep.subr.mxu0 0.0
  %599 = vmatpush1.msra.mxu0 0.0
  %600 = vmatprep.subr.mxu0 0.0
  %601 = vmatpush1.msra.mxu0 0.0
  %602 = vmatprep.subr.mxu0 0.0
  %603 = vmatpush1.msra.mxu0 0.0
  %604 = vmatprep.subr.mxu0 0.0
  %605 = vmatpush1.msra.mxu0 0.0
  %606 = vmatprep.subr.mxu0 0.0
  %607 = vmatpush1.msra.mxu0 0.0
  %608 = vmatprep.subr.mxu0 0.0
  %609 = vmatpush1.msra.mxu0 0.0
  %610 = vmatprep.subr.mxu0 0.0
  %611 = vmatpush1.msra.mxu0 0.0
  %612 = vmatprep.subr.mxu0 0.0
  %613 = vmatpush1.msra.mxu0 0.0
  %614 = vmatprep.subr.mxu0 0.0
  %615 = vmatpush1.msra.mxu0 0.0
  %616 = vmatprep.subr.mxu0 0.0
  %617 = vmatpush1.msra.mxu0 0.0
  %618 = vmatprep.subr.mxu0 0.0
  %619 = vmatpush1.msra.mxu0 0.0
  %620 = vmatprep.subr.mxu0 0.0
  %621 = vmatpush1.msra.mxu0 0.0
  %622 = vmatprep.subr.mxu0 0.0
  %623 = vmatpush1.msra.mxu0 0.0
  %624 = vmatprep.subr.mxu0 0.0
  %625 = vmatpush1.msra.mxu0 0.0
  %626 = vmatprep.mubr.f32.mxu0 0.0
  %627 = vmatmul.mubr.f32.gmra.mrb[0].mxu0 %v554
  %v628 = vpop.f32.mrb[0].mxu0
  %v629 = vadd.f32 %v551, %v628
  %v630 = vpop.f32.mrb[0].mxu0
  %v631 = vadd.f32 %v551, %v630
  %632 = vdwg.mxu0
  %v633 = vmax.f32 %v629, 0.0
  %v634 = vmax.f32 %v631, 0.0
  %v635 = vld [vmem:[%s3] sm:$0x7]
  %v636 = vld [vmem:[%s4] sm:$0x7]
  %638 = vset.pattern.permute.xlu0 0
  %639 = vperm.xlu0 %638, %v636
  %v640 = vpop.permute.xlu0 %639
  %v643 = vsel %vm455, %v635, 0
  %645 = vmatprep.subr.mxu0 %v634
  %646 = vmatpush1.msra.mxu0 %v633
  %647 = vmatprep.subr.mxu0 0.0
  %648 = vmatpush1.msra.mxu0 0.0
  %649 = vmatprep.subr.mxu0 0.0
  %650 = vmatpush1.msra.mxu0 0.0
  %651 = vmatprep.subr.mxu0 0.0
  %652 = vmatpush1.msra.mxu0 0.0
  %653 = vmatprep.subr.mxu0 0.0
  %654 = vmatpush1.msra.mxu0 0.0
  %655 = vmatprep.subr.mxu0 0.0
  %656 = vmatpush1.msra.mxu0 0.0
  %657 = vmatprep.subr.mxu0 0.0
  %658 = vmatpush1.msra.mxu0 0.0
  %659 = vmatprep.subr.mxu0 0.0
  %660 = vmatpush1.msra.mxu0 0.0
  %661 = vmatprep.subr.mxu0 0.0
  %662 = vmatpush1.msra.mxu0 0.0
  %663 = vmatprep.subr.mxu0 0.0
  %664 = vmatpush1.msra.mxu0 0.0
  %665 = vmatprep.subr.mxu0 0.0
  %666 = vmatpush1.msra.mxu0 0.0
  %667 = vmatprep.subr.mxu0 0.0
  %668 = vmatpush1.msra.mxu0 0.0
  %669 = vmatprep.subr.mxu0 0.0
  %670 = vmatpush1.msra.mxu0 0.0
  %671 = vmatprep.subr.mxu0 0.0
  %672 = vmatpush1.msra.mxu0 0.0
  %673 = vmatprep.subr.mxu0 0.0
  %674 = vmatpush1.msra.mxu0 0.0
  %675 = vmatprep.subr.mxu0 0.0
  %676 = vmatpush1.msra.mxu0 0.0
  %677 = vmatprep.subr.mxu0 0.0
  %678 = vmatpush1.msra.mxu0 0.0
  %679 = vmatprep.subr.mxu0 0.0
  %680 = vmatpush1.msra.mxu0 0.0
  %681 = vmatprep.subr.mxu0 0.0
  %682 = vmatpush1.msra.mxu0 0.0
  %683 = vmatprep.subr.mxu0 0.0
  %684 = vmatpush1.msra.mxu0 0.0
  %685 = vmatprep.subr.mxu0 0.0
  %686 = vmatpush1.msra.mxu0 0.0
  %687 = vmatprep.subr.mxu0 0.0
  %688 = vmatpush1.msra.mxu0 0.0
  %689 = vmatprep.subr.mxu0 0.0
  %690 = vmatpush1.msra.mxu0 0.0
  %691 = vmatprep.subr.mxu0 0.0
  %692 = vmatpush1.msra.mxu0 0.0
  %693 = vmatprep.subr.mxu0 0.0
  %694 = vmatpush1.msra.mxu0 0.0
  %695 = vmatprep.subr.mxu0 0.0
  %696 = vmatpush1.msra.mxu0 0.0
  %697 = vmatprep.subr.mxu0 0.0
  %698 = vmatpush1.msra.mxu0 0.0
  %699 = vmatprep.subr.mxu0 0.0
  %700 = vmatpush1.msra.mxu0 0.0
  %701 = vmatprep.subr.mxu0 0.0
  %702 = vmatpush1.msra.mxu0 0.0
  %703 = vmatprep.subr.mxu0 0.0
  %704 = vmatpush1.msra.mxu0 0.0
  %705 = vmatprep.subr.mxu0 0.0
  %706 = vmatpush1.msra.mxu0 0.0
  %707 = vmatprep.subr.mxu0 0.0
  %708 = vmatpush1.msra.mxu0 0.0
  %709 = vmatprep.mubr.f32.mxu0 0.0
  %710 = vmatmul.mubr.f32.gmra.mrb[0].mxu0 %v643
  %v711 = vpop.f32.mrb[0].mxu0
  %v712 = vadd.f32 %v640, %v711
  %v713 = vpop.f32.mrb[0].mxu0
  %v714 = vadd.f32 %v640, %v713
  %715 = vdwg.mxu0
  %v718 = vcombine.low %v712, %v714
  %s720 = scalar_lea.vmem %s5, 8
  %721 = vst [vmem:[%s720] sm:$0x77] %v718
  // Predicated region
  $region22: #{single_task_backbone.1} parent=0 // pred_check
    _
  $region23: #{single_task_backbone.1} parent=0 // pred_check_branch
    %723 = sbr.rel (0) target = $region25
  $region24: #{single_task_backbone.1} parent=0 // pred_region
    _
  $region25: #{single_task_backbone.1} parent=0 // pred_fallthru
    _
  // Predicated region
  $region26: #{single_task_backbone.1} parent=0 // pred_check
    _
  $region27: #{single_task_backbone.1} parent=0 // pred_check_branch
    %725 = sbr.rel (0) target = $region29
  $region28: #{single_task_backbone.1} parent=0 // pred_region
    _
  $region29: #{single_task_backbone.1} parent=0 // pred_fallthru
    _

</llo_original>
